<compile_context>
chip_gen: v5e
topology: v5e:2x2
jax: 0.10.0
libtpu: 0.0.40
codegen_flags: <defaults>
</compile_context>

<pallas_src>
import functools

import jax
import jax.numpy as jnp
from jax.experimental import pallas as pl
from jax.experimental.pallas import tpu as pltpu


def _cdiv(a, b):
    return -(-a // b)


def _round_up(a, b):
    return _cdiv(a, b) * b


def _pick_cout_tile(cout_g):
    """Tile per-group output channels only when large & cleanly divisible."""
    for t in (256, 128):
        if cout_g > t and cout_g % t == 0:
            return t
    return cout_g


def _conv_kernel(x_ref, w_ref, b_ref, o_ref, xcol_ref, *, k, s, Ws, Mt_pad, Cpad):
    """Fused grouped-conv output tile.

    x_ref   : (1, 1, 1, s*s, Cpad, Lf_tile)  bf16  phase planes of this row tile
    w_ref   : (1, tco, k*k*Cpad)             bf16  tap-major, channel-minor
    b_ref   : (1, tco, 1)                    f32
    o_ref   : (1, 1, tco, Mt_pad)                  output rows on the lane axis
    xcol_ref: (k*k*Cpad, Mt_pad)             bf16  VMEM scratch (in-VMEM im2col)
    """
    # Gather the k*k taps into one (K, M) operand.  Each tap is a dense
    # unit-stride lane slice of its phase plane (unaligned lane offsets lower
    # to XLU rotates); each slab store is sublane-aligned because Cpad is a
    # multiple of the packing (16 rows for bf16).
    for kh in range(k):
        for kw in range(k):
            tap = kh * k + kw
            ph = (kh % s) * s + (kw % s)          # phase plane of this tap
            off = (kh // s) * Ws + (kw // s)      # dense flat offset inside it
            xcol_ref[pl.ds(tap * Cpad, Cpad), :] = (
                x_ref[0, 0, 0, ph, :, pl.ds(off, Mt_pad)])
    # One deep MXU contraction (K = k*k*Cpad) with f32 accumulation kept in the
    # MXU result path -- no per-tap accumulator read-modify-write.
    acc = jnp.dot(w_ref[0], xcol_ref[...], preferred_element_type=jnp.float32)
    o_ref[0, 0] = (acc + b_ref[0]).astype(o_ref.dtype)


def conv2d_pallas(x_nchw, weight, bias, *, stride, groups,
                  compute_dtype=jnp.bfloat16, out_dtype=jnp.float32,
                  max_rows_per_tile=None, vmem_budget_bytes=None):
    """Equivalent of nn.Conv2d(Cin, Cout, k, stride, padding=k//2, groups).

    x_nchw: (N, Cin, H, W); weight: (Cout, Cin//groups, k, k); bias: (Cout,)
    Returns (N, Cout, Hout, Wout) in `out_dtype`.
    """
    N, Cin, H, W = x_nchw.shape
    Cout, Cin_g, k, k2 = weight.shape
    assert k == k2
    assert Cin % groups == 0 and Cout % groups == 0
    assert Cin_g == Cin // groups
    G = groups
    Cout_g = Cout // G
    pad = k // 2
    s = int(stride)

    Hout = (H + 2 * pad - k) // s + 1
    Wout = (W + 2 * pad - k) // s + 1

    isz = jnp.dtype(compute_dtype).itemsize
    out_itemsize = jnp.dtype(out_dtype).itemsize
    align = 8 * (4 // isz)                 # sublane packing: 8 (f32) / 16 (bf16)
    Cpad = _round_up(Cin_g, align)         # aligned scratch slab stores
    ss = s * s
    kk = k * k
    KKC = kk * Cpad

    Ws = _cdiv(W + 2 * pad, s)             # phase-plane (sub-sampled) width
    Ah = (k - 1) // s                      # row halo in sub-rows
    Aw = (k - 1) // s                      # col halo in sub-cols

    tco = _pick_cout_tile(Cout_g)
    n_co = Cout_g // tco

    # ---- VMEM budget (per-generation safe) & output-row tile selection -----
    if vmem_budget_bytes is None:
        cap = 64 << 20                                 # assume v7x per-core VMEM
        try:
            cap = int(getattr(pltpu.get_tpu_info(), "vmem_capacity_bytes", cap))
        except Exception:
            pass
        # ~48 MiB on v7x (64 MiB total, leave headroom), up to 96 MiB on v5e/v6e.
        vmem_budget_bytes = min(cap * 3 // 4, 96 << 20)
    tile_target = max(vmem_budget_bytes - (8 << 20), 8 << 20)

    w_blk = tco * KKC * isz
    b_blk = tco * 4

    def _tile_bytes(rows):
        mt = _round_up(rows * Ws, 128)
        lf = _cdiv(Ah * Ws + Aw + mt, Ws) * Ws
        x_blk = ss * Cpad * lf * isz
        o_blk = tco * mt * out_itemsize
        scratch = KKC * mt * isz
        return 2 * (x_blk + w_blk + b_blk + o_blk) + scratch

    th = Hout if max_rows_per_tile is None else max(1, min(Hout, int(max_rows_per_tile)))
    while th > 1 and _tile_bytes(th) > tile_target:
        th -= 1
    n_sp = _cdiv(Hout, th)
    Mt = th * Ws
    Mt_pad = _round_up(Mt, 128)            # lane-dense (unmasked) output stores
    th_in = _cdiv(Ah * Ws + Aw + Mt_pad, Ws)
    Lf_tile = th_in * Ws

    # ---- wrapper-side layout prep (pad -> phase planes -> row windows) -----
    Hs_tot = max((n_sp - 1) * th + th_in, _cdiv(H + 2 * pad, s))
    Hp2 = Hs_tot * s
    Wp2 = Ws * s

    x5 = x_nchw.astype(compute_dtype).reshape(N, G, Cin_g, H, W)
    xp = jnp.pad(x5, ((0, 0), (0, 0), (0, Cpad - Cin_g),
                      (pad, Hp2 - pad - H), (pad, Wp2 - pad - W)))
    # Phase decomposition: for stride>1 split both spatial dims into
    # (sub-sampled index, phase) so the kernel only does dense unit-stride lane
    # slices; for stride==1 this is a free reshape (size-1 phase axes).
    xd = xp.reshape(N, G, Cpad, Hs_tot, s, Ws, s)
    xd = jnp.transpose(xd, (0, 1, 4, 6, 2, 3, 5))      # (N,G,s,s,Cpad,Hs,Ws)
    if n_sp == 1:
        xt = xd[:, :, None, :, :, :, 0:th_in, :]
    else:
        xt = jnp.stack(
            [xd[:, :, :, :, :, sp * th: sp * th + th_in, :] for sp in range(n_sp)],
            axis=2)                                    # (N,G,n_sp,s,s,Cpad,th_in,Ws)
    xt = xt.reshape(N, G, n_sp, ss, Cpad, Lf_tile)

    w5 = weight.astype(compute_dtype).reshape(G, Cout_g, Cin_g, k, k)
    wf = jnp.transpose(w5, (0, 1, 3, 4, 2))            # tap-major, channel-minor
    wf = jnp.pad(wf, ((0, 0), (0, 0), (0, 0), (0, 0), (0, Cpad - Cin_g)))
    wf = wf.reshape(G, Cout_g, KKC)
    bf = bias.astype(jnp.float32).reshape(G, Cout_g, 1)

    kern = functools.partial(_conv_kernel, k=k, s=s, Ws=Ws, Mt_pad=Mt_pad, Cpad=Cpad)

    vmem_limit = int(min(vmem_budget_bytes, max(_tile_bytes(th) + (2 << 20), 32 << 20)))
    cost = pl.CostEstimate(
        flops=int(2 * N * G * Cout_g * n_sp * Mt_pad * KKC),
        transcendentals=0,
        bytes_accessed=int(xt.size * isz + N * n_sp * wf.size * isz + Cout * 4
                           + N * G * Cout_g * n_sp * Mt_pad * out_itemsize),
    )

    out = pl.pallas_call(
        kern,
        out_shape=jax.ShapeDtypeStruct((N, G, Cout_g, n_sp * Mt_pad), out_dtype),
        grid_spec=pltpu.PrefetchScalarGridSpec(
            num_scalar_prefetch=0,
            # cout innermost: the activation row-tile stays resident across the
            # cout loop, weight tiles stream (re-DMA'd per image/row-tile).
            grid=(G, N, n_sp, n_co),
            in_specs=[
                pl.BlockSpec((1, 1, 1, ss, Cpad, Lf_tile),
                             lambda g, n, sp, c: (n, g, sp, 0, 0, 0)),
                pl.BlockSpec((1, tco, KKC), lambda g, n, sp, c: (g, c, 0)),
                pl.BlockSpec((1, tco, 1), lambda g, n, sp, c: (g, c, 0)),
            ],
            out_specs=pl.BlockSpec((1, 1, tco, Mt_pad),
                                   lambda g, n, sp, c: (n, g, c, sp)),
            scratch_shapes=[pltpu.VMEM((KKC, Mt_pad), compute_dtype)],
        ),
        compiler_params=pltpu.CompilerParams(
            dimension_semantics=("parallel", "parallel", "parallel", "parallel"),
            vmem_limit_bytes=vmem_limit),
        cost_estimate=cost,
    )(xt, wf, bf)

    # (N, G, Cout_g, n_sp*Mt_pad) -> (N, Cout, Hout, Wout).  All reshapes keep
    # NCHW order; only the lane/row/col junk padding is sliced off.
    out = out.reshape(N, G, Cout_g, n_sp, Mt_pad)[..., :Mt]
    out = out.reshape(N, G * Cout_g, n_sp * th, Ws)[:, :, :Hout, :Wout]
    return out


if __name__ == "__main__":
    key = jax.random.PRNGKey(0)
    k_x, k_w, k_b = jax.random.split(key, 3)

    # ConvNet(in_channels=4, out_channels=8, kernel_size=3, stride=1, groups=2)
    N, Cin, H, W = 2, 4, 16, 16
    Cout, ksz, groups = 8, 3, 2
    x = jax.random.normal(k_x, (N, Cin, H, W), dtype=jnp.float32)
    weight = jax.random.normal(k_w, (Cout, Cin // groups, ksz, ksz),
                               dtype=jnp.float32) * 0.1
    bias = jax.random.normal(k_b, (Cout,), dtype=jnp.float32) * 0.1

    def ref_conv(xv, wv, bv, stride):
        p = ksz // 2
        return jax.lax.conv_general_dilated(
            xv, wv, window_strides=(stride, stride),
            padding=((p, p), (p, p)),
            dimension_numbers=("NCHW", "OIHW", "NCHW"),
            feature_group_count=groups) + bv.reshape(1, -1, 1, 1)

    # stride=1: the module's configuration.
    fwd1 = jax.jit(functools.partial(conv2d_pallas, stride=1, groups=groups))
    out1 = jax.block_until_ready(fwd1(x, weight, bias))
    ref1 = ref_conv(x, weight, bias, 1)
    assert out1.shape == ref1.shape == (N, Cout, H, W)
    err1 = float(jnp.max(jnp.abs(out1 - ref1)))
    assert err1 < 3e-2, f"stride=1 max abs err {err1}"

    # stride=2 with a forced small row tile: exercises the phase-decomposed
    # (dense-load) stride path and the multi-tile spatial blocking.
    fwd2 = jax.jit(functools.partial(conv2d_pallas, stride=2, groups=groups,
                                     max_rows_per_tile=3))
    out2 = jax.block_until_ready(fwd2(x, weight, bias))
    ref2 = ref_conv(x, weight, bias, 2)
    assert out2.shape == ref2.shape
    err2 = float(jnp.max(jnp.abs(out2 - ref2)))
    assert err2 < 3e-2, f"stride=2 max abs err {err2}"

    print("KERNEL_OK")
</pallas_src>

<mosaic_0001>
module attributes {stable_mosaic.version = 11 : i64} {
  func.func @_conv_kernel(%arg0: i32, %arg1: i32, %arg2: i32, %arg3: i32, %arg4: memref<1x1x1x1x16x432xbf16, #tpu.memory_space<vmem>>, %arg5: memref<1x4x144xbf16, #tpu.memory_space<vmem>>, %arg6: memref<1x4x1xf32, #tpu.memory_space<vmem>>, %arg7: memref<1x1x4x384xf32, #tpu.memory_space<vmem>>, %arg8: memref<144x384xbf16, #tpu.memory_space<vmem>>) attributes {dimension_semantics = [#tpu.dimension_semantics<parallel>, #tpu.dimension_semantics<parallel>, #tpu.dimension_semantics<parallel>, #tpu.dimension_semantics<parallel>], iteration_bounds = array<i64: 2, 2, 1, 1>, scalar_prefetch = 0 : i64, scratch_operands = 1 : i64, tpu.core_type = #tpu.core_type<tc>, window_params = [{transform_indices = @transform_0, window_bounds = array<i64: 1, 1, 1, 1, 16, 432>}, {transform_indices = @transform_1, window_bounds = array<i64: 1, 4, 144>}, {transform_indices = @transform_2, window_bounds = array<i64: 1, 4, 1>}, {transform_indices = @transform_3, window_bounds = array<i64: 1, 1, 4, 384>}]} {
    %c0 = arith.constant 0 : index
    %c0_0 = arith.constant 0 : index
    %c0_1 = arith.constant 0 : index
    %c0_2 = arith.constant 0 : index
    %c0_3 = arith.constant 0 : index
    %c0_4 = arith.constant 0 : index
    %0 = vector.load %arg4[%c0, %c0_0, %c0_1, %c0_2, %c0_3, %c0_4] : memref<1x1x1x1x16x432xbf16, #tpu.memory_space<vmem>>, vector<1x1x1x1x16x384xbf16>
    %1 = vector.shape_cast %0 : vector<1x1x1x1x16x384xbf16> to vector<16x384xbf16>
    %c0_5 = arith.constant 0 : index
    %c0_6 = arith.constant 0 : index
    %2 = vector.load %arg8[%c0_5, %c0_6] : memref<144x384xbf16, #tpu.memory_space<vmem>>, vector<16x384xbf16>
    tpu.vector_store %arg8[%c0_5, %c0_6], %1 {strides = array<i32>} : memref<144x384xbf16, #tpu.memory_space<vmem>>, vector<16x384xbf16>,
    %c0_7 = arith.constant 0 : index
    %c0_8 = arith.constant 0 : index
    %c0_9 = arith.constant 0 : index
    %c0_10 = arith.constant 0 : index
    %c0_11 = arith.constant 0 : index
    %c1 = arith.constant 1 : index
    %3 = vector.load %arg4[%c0_7, %c0_8, %c0_9, %c0_10, %c0_11, %c1] : memref<1x1x1x1x16x432xbf16, #tpu.memory_space<vmem>>, vector<1x1x1x1x16x384xbf16>
    %4 = vector.shape_cast %3 : vector<1x1x1x1x16x384xbf16> to vector<16x384xbf16>
    %c16 = arith.constant 16 : index
    %c0_12 = arith.constant 0 : index
    %5 = vector.load %arg8[%c16, %c0_12] : memref<144x384xbf16, #tpu.memory_space<vmem>>, vector<16x384xbf16>
    tpu.vector_store %arg8[%c16, %c0_12], %4 {strides = array<i32>} : memref<144x384xbf16, #tpu.memory_space<vmem>>, vector<16x384xbf16>,
    %c0_13 = arith.constant 0 : index
    %c0_14 = arith.constant 0 : index
    %c0_15 = arith.constant 0 : index
    %c0_16 = arith.constant 0 : index
    %c0_17 = arith.constant 0 : index
    %c2 = arith.constant 2 : index
    %6 = vector.load %arg4[%c0_13, %c0_14, %c0_15, %c0_16, %c0_17, %c2] : memref<1x1x1x1x16x432xbf16, #tpu.memory_space<vmem>>, vector<1x1x1x1x16x384xbf16>
    %7 = vector.shape_cast %6 : vector<1x1x1x1x16x384xbf16> to vector<16x384xbf16>
    %c32 = arith.constant 32 : index
    %c0_18 = arith.constant 0 : index
    %8 = vector.load %arg8[%c32, %c0_18] : memref<144x384xbf16, #tpu.memory_space<vmem>>, vector<16x384xbf16>
    tpu.vector_store %arg8[%c32, %c0_18], %7 {strides = array<i32>} : memref<144x384xbf16, #tpu.memory_space<vmem>>, vector<16x384xbf16>,
    %c0_19 = arith.constant 0 : index
    %c0_20 = arith.constant 0 : index
    %c0_21 = arith.constant 0 : index
    %c0_22 = arith.constant 0 : index
    %c0_23 = arith.constant 0 : index
    %c18 = arith.constant 18 : index
    %9 = vector.load %arg4[%c0_19, %c0_20, %c0_21, %c0_22, %c0_23, %c18] : memref<1x1x1x1x16x432xbf16, #tpu.memory_space<vmem>>, vector<1x1x1x1x16x384xbf16>
    %10 = vector.shape_cast %9 : vector<1x1x1x1x16x384xbf16> to vector<16x384xbf16>
    %c48 = arith.constant 48 : index
    %c0_24 = arith.constant 0 : index
    %11 = vector.load %arg8[%c48, %c0_24] : memref<144x384xbf16, #tpu.memory_space<vmem>>, vector<16x384xbf16>
    tpu.vector_store %arg8[%c48, %c0_24], %10 {strides = array<i32>} : memref<144x384xbf16, #tpu.memory_space<vmem>>, vector<16x384xbf16>,
    %c0_25 = arith.constant 0 : index
    %c0_26 = arith.constant 0 : index
    %c0_27 = arith.constant 0 : index
    %c0_28 = arith.constant 0 : index
    %c0_29 = arith.constant 0 : index
    %c19 = arith.constant 19 : index
    %12 = vector.load %arg4[%c0_25, %c0_26, %c0_27, %c0_28, %c0_29, %c19] : memref<1x1x1x1x16x432xbf16, #tpu.memory_space<vmem>>, vector<1x1x1x1x16x384xbf16>
    %13 = vector.shape_cast %12 : vector<1x1x1x1x16x384xbf16> to vector<16x384xbf16>
    %c64 = arith.constant 64 : index
    %c0_30 = arith.constant 0 : index
    %14 = vector.load %arg8[%c64, %c0_30] : memref<144x384xbf16, #tpu.memory_space<vmem>>, vector<16x384xbf16>
    tpu.vector_store %arg8[%c64, %c0_30], %13 {strides = array<i32>} : memref<144x384xbf16, #tpu.memory_space<vmem>>, vector<16x384xbf16>,
    %c0_31 = arith.constant 0 : index
    %c0_32 = arith.constant 0 : index
    %c0_33 = arith.constant 0 : index
    %c0_34 = arith.constant 0 : index
    %c0_35 = arith.constant 0 : index
    %c20 = arith.constant 20 : index
    %15 = vector.load %arg4[%c0_31, %c0_32, %c0_33, %c0_34, %c0_35, %c20] : memref<1x1x1x1x16x432xbf16, #tpu.memory_space<vmem>>, vector<1x1x1x1x16x384xbf16>
    %16 = vector.shape_cast %15 : vector<1x1x1x1x16x384xbf16> to vector<16x384xbf16>
    %c80 = arith.constant 80 : index
    %c0_36 = arith.constant 0 : index
    %17 = vector.load %arg8[%c80, %c0_36] : memref<144x384xbf16, #tpu.memory_space<vmem>>, vector<16x384xbf16>
    tpu.vector_store %arg8[%c80, %c0_36], %16 {strides = array<i32>} : memref<144x384xbf16, #tpu.memory_space<vmem>>, vector<16x384xbf16>,
    %c0_37 = arith.constant 0 : index
    %c0_38 = arith.constant 0 : index
    %c0_39 = arith.constant 0 : index
    %c0_40 = arith.constant 0 : index
    %c0_41 = arith.constant 0 : index
    %c36 = arith.constant 36 : index
    %18 = vector.load %arg4[%c0_37, %c0_38, %c0_39, %c0_40, %c0_41, %c36] : memref<1x1x1x1x16x432xbf16, #tpu.memory_space<vmem>>, vector<1x1x1x1x16x384xbf16>
    %19 = vector.shape_cast %18 : vector<1x1x1x1x16x384xbf16> to vector<16x384xbf16>
    %c96 = arith.constant 96 : index
    %c0_42 = arith.constant 0 : index
    %20 = vector.load %arg8[%c96, %c0_42] : memref<144x384xbf16, #tpu.memory_space<vmem>>, vector<16x384xbf16>
    tpu.vector_store %arg8[%c96, %c0_42], %19 {strides = array<i32>} : memref<144x384xbf16, #tpu.memory_space<vmem>>, vector<16x384xbf16>,
    %c0_43 = arith.constant 0 : index
    %c0_44 = arith.constant 0 : index
    %c0_45 = arith.constant 0 : index
    %c0_46 = arith.constant 0 : index
    %c0_47 = arith.constant 0 : index
    %c37 = arith.constant 37 : index
    %21 = vector.load %arg4[%c0_43, %c0_44, %c0_45, %c0_46, %c0_47, %c37] : memref<1x1x1x1x16x432xbf16, #tpu.memory_space<vmem>>, vector<1x1x1x1x16x384xbf16>
    %22 = vector.shape_cast %21 : vector<1x1x1x1x16x384xbf16> to vector<16x384xbf16>
    %c112 = arith.constant 112 : index
    %c0_48 = arith.constant 0 : index
    %23 = vector.load %arg8[%c112, %c0_48] : memref<144x384xbf16, #tpu.memory_space<vmem>>, vector<16x384xbf16>
    tpu.vector_store %arg8[%c112, %c0_48], %22 {strides = array<i32>} : memref<144x384xbf16, #tpu.memory_space<vmem>>, vector<16x384xbf16>,
    %c0_49 = arith.constant 0 : index
    %c0_50 = arith.constant 0 : index
    %c0_51 = arith.constant 0 : index
    %c0_52 = arith.constant 0 : index
    %c0_53 = arith.constant 0 : index
    %c38 = arith.constant 38 : index
    %24 = vector.load %arg4[%c0_49, %c0_50, %c0_51, %c0_52, %c0_53, %c38] : memref<1x1x1x1x16x432xbf16, #tpu.memory_space<vmem>>, vector<1x1x1x1x16x384xbf16>
    %25 = vector.shape_cast %24 : vector<1x1x1x1x16x384xbf16> to vector<16x384xbf16>
    %c128 = arith.constant 128 : index
    %c0_54 = arith.constant 0 : index
    %26 = vector.load %arg8[%c128, %c0_54] : memref<144x384xbf16, #tpu.memory_space<vmem>>, vector<16x384xbf16>
    tpu.vector_store %arg8[%c128, %c0_54], %25 {strides = array<i32>} : memref<144x384xbf16, #tpu.memory_space<vmem>>, vector<16x384xbf16>,
    %c0_55 = arith.constant 0 : index
    %c0_56 = arith.constant 0 : index
    %c0_57 = arith.constant 0 : index
    %27 = vector.load %arg5[%c0_55, %c0_56, %c0_57] : memref<1x4x144xbf16, #tpu.memory_space<vmem>>, vector<1x4x144xbf16>
    %28 = vector.shape_cast %27 : vector<1x4x144xbf16> to vector<4x144xbf16>
    %c0_58 = arith.constant 0 : index
    %c0_59 = arith.constant 0 : index
    %29 = vector.load %arg8[%c0_58, %c0_59] : memref<144x384xbf16, #tpu.memory_space<vmem>>, vector<144x384xbf16>
    %cst = arith.constant dense<0.000000e+00> : vector<4x384xf32>
    %30 = tpu.matmul %28, %29, %cst {dimension_numbers = #tpu.dot_dimension_numbers<[1], [0], [0], [1], [0, 0, 1, 1], [], []>} : vector<4x144xbf16>, vector<144x384xbf16>, vector<4x384xf32> -> vector<4x384xf32>
    %c0_60 = arith.constant 0 : index
    %c0_61 = arith.constant 0 : index
    %c0_62 = arith.constant 0 : index
    %31 = vector.load %arg6[%c0_60, %c0_61, %c0_62] : memref<1x4x1xf32, #tpu.memory_space<vmem>>, vector<1x4x1xf32>
    %32 = vector.shape_cast %31 : vector<1x4x1xf32> to vector<4x1xf32>
    %33 = vector.broadcast %32 : vector<4x1xf32> to vector<4x384xf32>
    %34 = arith.addf %30, %33 : vector<4x384xf32>
    %c0_63 = arith.constant 0 : index
    %c0_64 = arith.constant 0 : index
    %c0_65 = arith.constant 0 : index
    %c0_66 = arith.constant 0 : index
    %35 = vector.load %arg7[%c0_63, %c0_64, %c0_65, %c0_66] : memref<1x1x4x384xf32, #tpu.memory_space<vmem>>, vector<1x1x4x384xf32>
    %36 = vector.shape_cast %35 : vector<1x1x4x384xf32> to vector<4x384xf32>
    %37 = vector.shape_cast %34 : vector<4x384xf32> to vector<1x1x4x384xf32>
    tpu.vector_store %arg7[%c0_63, %c0_64, %c0_65, %c0_66], %37 {strides = array<i32>} : memref<1x1x4x384xf32, #tpu.memory_space<vmem>>, vector<1x1x4x384xf32>,
    return
  }
  func.func @transform_0(%arg0: i32, %arg1: i32, %arg2: i32, %arg3: i32) -> (i32, i32, i32, i32, i32, i32) {
    %c0_i32 = arith.constant 0 : i32
    %c0_i32_0 = arith.constant 0 : i32
    %c0_i32_1 = arith.constant 0 : i32
    %c0_i32_2 = arith.constant 0 : i32
    return %arg1, %arg0, %arg2, %c0_i32, %c0_i32_0, %c0_i32_1 : i32, i32, i32, i32, i32, i32
  }
  func.func @transform_1(%arg0: i32, %arg1: i32, %arg2: i32, %arg3: i32) -> (i32, i32, i32) {
    %c0_i32 = arith.constant 0 : i32
    %c0_i32_0 = arith.constant 0 : i32
    return %arg0, %arg3, %c0_i32 : i32, i32, i32
  }
  func.func @transform_2(%arg0: i32, %arg1: i32, %arg2: i32, %arg3: i32) -> (i32, i32, i32) {
    %c0_i32 = arith.constant 0 : i32
    %c0_i32_0 = arith.constant 0 : i32
    return %arg0, %arg3, %c0_i32 : i32, i32, i32
  }
  func.func @transform_3(%arg0: i32, %arg1: i32, %arg2: i32, %arg3: i32) -> (i32, i32, i32, i32) {
    %c0_i32 = arith.constant 0 : i32
    return %arg1, %arg0, %arg3, %arg2 : i32, i32, i32, i32
  }
}

</mosaic_0001>

<llo_original>
// kernel: conv2d_pallas.1
$region0: #{conv2d_pallas.1}
  #allocation0 [shape = 'u32[]', space=smem, size = 0x4, offset = 0x4, fixed_abs, tag = 'smem constant byte address 0x4 - core index']
  #allocation1 [shape = 'u32[72,128]{1,0:T(1,128)}', space=vmem, size = 0x9000, scoped, tag = 'internal scratch']
  #allocation2 [shape = 'bf16[144,384]{1,0:T(8,128)(2,1)}', space=vmem, size = 0x1b000, scoped, tag = 'scratch operand']
  %s0 = inlined_call_operand.vmem [shape: bf16[2,2,1,1,16,432], index: 0, kind: input, shape index: {}]
  %s1 = inlined_call_operand.vmem [shape: bf16[2,4,144], index: 1, kind: input, shape index: {}]
  %s2 = inlined_call_operand.vmem [shape: f32[2,4,1], index: 2, kind: input, shape index: {}]
  %s3 = inlined_call_operand.vmem [shape: f32[2,2,4,384], index: 3, kind: output, shape index: {}]
  %s4 = sld [smem:[#allocation0]]
  $region45: #{conv2d_pallas.1} parent=0
    _
  %s6 = ssub.s32 1, %s4
  %s7 = scalar_select 0, %s6, %s4
  loop: start=0, step=1, limit=6
  $region2: #{conv2d_pallas.1} parent=0 // loop_pre_header
    _
  $region3: #{conv2d_pallas.1} parent=0 // loop_header
    %s9 = sphi 0, %s13
    %p10 = scmp.ge.s32.totalorder %s9, 6
    %s16 = sphi 0, %s42
    %s17 = sphi 0, %s38
    %s18 = sphi 0, %s34
    %s19 = sphi 0, %s30
    %s20 = sphi 0, %s16
    %s21 = sphi 0, %s17
    %s22 = sphi 0, %s18
    %s23 = sphi 0, %s19
    %s24 = sphi 0, %s20
    %s25 = sphi 0, %s21
    %s26 = sphi 0, %s22
    %s27 = sphi 0, %s23
    %s49 = sphi 0, %s51
    %s52 = sphi 0, %s49
    %s53 = sphi 0, %s52
    %s69 = sphi 0, %s53
    %s77 = sphi 0, %s79
    %s80 = sphi 0, %s77
    %s81 = sphi 0, %s80
    %s97 = sphi 0, %s81
    %s105 = sphi 0, %s107
    %s108 = sphi 0, %s105
    %s109 = sphi 0, %s108
    %s125 = sphi 0, %s109
    %s137 = sphi 0, %s139
    %s140 = sphi 0, %s137
    %s141 = sphi 0, %s140
    %s157 = sphi 0, %s141
  $region4: #{conv2d_pallas.1} parent=0 // loop_header_branch
    %12 = sbr.rel (%p10) target = $region8
  $region5: #{conv2d_pallas.1} parent=0 // loop_body
    %s14 = ssub.s32 %s9, 1
    %s15 = ssub.s32 %s9, 2
    %s28 = sadd.s32 1, %s19
    %p29 = scmp.ge.s32.totalorder %s28, 1
    %s30 = scalar_select %p29, 0, %s28
    %s31 = sadd.s32 1, %s18
    %s32 = scalar_select %p29, %s31, %s18
    %p33 = scmp.ge.s32.totalorder %s32, 1
    %s34 = scalar_select %p33, 0, %s32
    %s35 = sadd.s32 1, %s17
    %s36 = scalar_select %p33, %s35, %s17
    %p37 = scmp.ge.s32.totalorder %s36, 2
    %s38 = scalar_select %p37, 0, %s36
    %s39 = sadd.s32 1, %s16
    %s40 = scalar_select %p37, %s39, %s16
    %p41 = scmp.ge.s32.totalorder %s40, 2
    %s42 = scalar_select %p41, 0, %s40
    %s43 = ssub.s32 %s17, %s38
    %s44 = ssub.s32 %s16, %s42
    %s45 = sor.u32 %s43, %s44
    %s46 = ssub.s32 %s18, %s34
    %s47 = sor.u32 %s45, %s46
    %p48 = scmp.eq.s32.totalorder %s47, 0
    %s50 = sadd.s32 %s49, 1
    %s51 = scalar_select %p48, %s49, %s50
    %p54 = pneg %p48
    %p55 = scmp.eq.s32.totalorder %s9, 3
    %p56 = por %p54, %p55
    %p57 = scmp.ne.s32.totalorder %s49, %s52
    %p58 = scmp.eq.s32.totalorder %s9, 0
    %p59 = por %p57, %p58
    %p60 = scmp.ne.s32.totalorder %s49, %s52
    %p61 = scmp.eq.s32.totalorder %s14, 3
    %p62 = por %p60, %p61
    %p63 = scmp.ne.s32.totalorder %s52, %s53
    %p64 = scmp.eq.s32.totalorder %s14, 0
    %p65 = por %p63, %p64
    %p66 = scmp.ne.s32.totalorder %s52, %s53
    %p67 = scmp.eq.s32.totalorder %s15, 3
    %p68 = por %p66, %p67
    %p70 = scmp.ne.s32.totalorder %s53, %s69
    %p71 = scmp.eq.s32.totalorder %s15, 0
    %p72 = por %p70, %p71
    %s73 = ssub.s32 %s16, %s42
    %s74 = ssub.s32 %s19, %s30
    %s75 = sor.u32 %s73, %s74
    %p76 = scmp.eq.s32.totalorder %s75, 0
    %s78 = sadd.s32 %s77, 1
    %s79 = scalar_select %p76, %s77, %s78
    %p82 = pneg %p76
    %p83 = scmp.eq.s32.totalorder %s9, 3
    %p84 = por %p82, %p83
    %p85 = scmp.ne.s32.totalorder %s77, %s80
    %p86 = scmp.eq.s32.totalorder %s9, 0
    %p87 = por %p85, %p86
    %p88 = scmp.ne.s32.totalorder %s77, %s80
    %p89 = scmp.eq.s32.totalorder %s14, 3
    %p90 = por %p88, %p89
    %p91 = scmp.ne.s32.totalorder %s80, %s81
    %p92 = scmp.eq.s32.totalorder %s14, 0
    %p93 = por %p91, %p92
    %p94 = scmp.ne.s32.totalorder %s80, %s81
    %p95 = scmp.eq.s32.totalorder %s15, 3
    %p96 = por %p94, %p95
    %p98 = scmp.ne.s32.totalorder %s81, %s97
    %p99 = scmp.eq.s32.totalorder %s15, 0
    %p100 = por %p98, %p99
    %s101 = ssub.s32 %s16, %s42
    %s102 = ssub.s32 %s19, %s30
    %s103 = sor.u32 %s101, %s102
    %p104 = scmp.eq.s32.totalorder %s103, 0
    %s106 = sadd.s32 %s105, 1
    %s107 = scalar_select %p104, %s105, %s106
    %p110 = pneg %p104
    %p111 = scmp.eq.s32.totalorder %s9, 3
    %p112 = por %p110, %p111
    %p113 = scmp.ne.s32.totalorder %s105, %s108
    %p114 = scmp.eq.s32.totalorder %s9, 0
    %p115 = por %p113, %p114
    %p116 = scmp.ne.s32.totalorder %s105, %s108
    %p117 = scmp.eq.s32.totalorder %s14, 3
    %p118 = por %p116, %p117
    %p119 = scmp.ne.s32.totalorder %s108, %s109
    %p120 = scmp.eq.s32.totalorder %s14, 0
    %p121 = por %p119, %p120
    %p122 = scmp.ne.s32.totalorder %s108, %s109
    %p123 = scmp.eq.s32.totalorder %s15, 3
    %p124 = por %p122, %p123
    %p126 = scmp.ne.s32.totalorder %s109, %s125
    %p127 = scmp.eq.s32.totalorder %s15, 0
    %p128 = por %p126, %p127
    %s129 = ssub.s32 %s17, %s38
    %s130 = ssub.s32 %s16, %s42
    %s131 = sor.u32 %s129, %s130
    %s132 = ssub.s32 %s19, %s30
    %s133 = sor.u32 %s131, %s132
    %s134 = ssub.s32 %s18, %s34
    %s135 = sor.u32 %s133, %s134
    %p136 = scmp.eq.s32.totalorder %s135, 0
    %s138 = sadd.s32 %s137, 1
    %s139 = scalar_select %p136, %s137, %s138
    %p142 = pneg %p136
    %p143 = scmp.eq.s32.totalorder %s9, 3
    %p144 = por %p142, %p143
    %p145 = scmp.ne.s32.totalorder %s137, %s140
    %p146 = scmp.eq.s32.totalorder %s9, 0
    %p147 = por %p145, %p146
    %p148 = scmp.ne.s32.totalorder %s137, %s140
    %p149 = scmp.eq.s32.totalorder %s14, 3
    %p150 = por %p148, %p149
    %p151 = scmp.ne.s32.totalorder %s140, %s141
    %p152 = scmp.eq.s32.totalorder %s14, 0
    %p153 = por %p151, %p152
    %p154 = scmp.ne.s32.totalorder %s140, %s141
    %p155 = scmp.eq.s32.totalorder %s15, 3
    %p156 = por %p154, %p155
    %p158 = scmp.ne.s32.totalorder %s141, %s157
    %p159 = scmp.eq.s32.totalorder %s15, 0
    %p160 = por %p158, %p159
    %p161 = scmp.le.s32.totalorder 1, %s9
    %p162 = scmp.lt.s32.totalorder %s9, 5
    %p163 = pnand %p161, %p162
    %p164 = pneg %p163
    // Predicated region
    $region9: #{conv2d_pallas.1} parent=5 // pred_check
      _
    $region10: #{conv2d_pallas.1} parent=5 // pred_check_branch
      %166 = sbr.rel (%p163) target = $region12
    $region11: #{conv2d_pallas.1} parent=5 // pred_region
      %s167 = ssub.s32 %s9, 1
    $region12: #{conv2d_pallas.1} parent=5 // pred_fallthru
      _
    %p168 = scmp.lt.s32.totalorder %s9, 4
    // Predicated region
    $region13: #{conv2d_pallas.1} parent=5 // pred_check
      %p169 = pneg %p168
    $region14: #{conv2d_pallas.1} parent=5 // pred_check_branch
      %171 = sbr.rel (%p169) target = $region16
    $region15: #{conv2d_pallas.1} parent=5 // pred_region
      // Predicated region
      $region17: #{conv2d_pallas.1} parent=15 // pred_check
        %p172 = pneg %p59
      $region18: #{conv2d_pallas.1} parent=15 // pred_check_branch
        %174 = sbr.rel (%p172) target = $region20
      $region19: #{conv2d_pallas.1} parent=15 // pred_region
        %p175 = scmp.lt.s32.totalorder %s17, 1
        %s176 = scalar_select %p175, %s17, 1
        %p177 = scmp.lt.s32.totalorder %s16, 1
        %s178 = scalar_select %p177, %s16, 1
        %p179 = scmp.lt.s32.totalorder %s18, 0
        %s180 = scalar_select %p179, %s18, 0
        %s181 = smul.addr %s180, 8
        %s182 = smul.addr %s178, 8
        %s183 = sadd.s32 %s181, %s182
        %s184 = smul.addr %s176, 16
        %s185 = sadd.s32 %s183, %s184
        %s186 = smul.addr %s185, 4
        %s187 = scalar_lea.vmem %s0, %s186
      $region20: #{conv2d_pallas.1} parent=15 // pred_fallthru
        _
      // Predicated region
      $region21: #{conv2d_pallas.1} parent=15 // pred_check
        %p188 = pneg %p87
      $region22: #{conv2d_pallas.1} parent=15 // pred_check_branch
        %190 = sbr.rel (%p188) target = $region24
      $region23: #{conv2d_pallas.1} parent=15 // pred_region
        %p191 = scmp.lt.s32.totalorder %s16, 1
        %s192 = scalar_select %p191, %s16, 1
        %p193 = scmp.lt.s32.totalorder %s19, 0
        %s194 = scalar_select %p193, %s19, 0
        %s195 = smul.addr %s194, 2
        %s196 = smul.addr %s192, 2
        %s197 = sadd.s32 %s195, %s196
        %s198 = smul.addr %s197, 2
        %s199 = scalar_lea.vmem %s1, %s198
      $region24: #{conv2d_pallas.1} parent=15 // pred_fallthru
        _
      // Predicated region
      $region25: #{conv2d_pallas.1} parent=15 // pred_check
        %p200 = pneg %p115
      $region26: #{conv2d_pallas.1} parent=15 // pred_check_branch
        %202 = sbr.rel (%p200) target = $region28
      $region27: #{conv2d_pallas.1} parent=15 // pred_region
        %p203 = scmp.lt.s32.totalorder %s16, 1
        %s204 = scalar_select %p203, %s16, 1
        %p205 = scmp.lt.s32.totalorder %s19, 0
        %s206 = scalar_select %p205, %s19, 0
        %s207 = sadd.s32 %s206, %s204
        %s208 = smul.addr %s207, 4
        %s209 = scalar_lea.vmem %s2, %s208
      $region28: #{conv2d_pallas.1} parent=15 // pred_fallthru
        _
    $region16: #{conv2d_pallas.1} parent=5 // pred_fallthru
      _
    %p210 = scmp.le.s32.totalorder 1, %s9
    %p211 = scmp.lt.s32.totalorder %s9, 5
    %p212 = pnand %p210, %p211
    %p213 = pneg %p212
    // Predicated region
    $region29: #{conv2d_pallas.1} parent=5 // pred_check
      _
    $region30: #{conv2d_pallas.1} parent=5 // pred_check_branch
      %215 = sbr.rel (%p212) target = $region32
    $region31: #{conv2d_pallas.1} parent=5 // pred_region
      %s216 = ssub.s32 %s9, 1
      %p217 = scmp.lt.s32.totalorder %s21, 1
      %s218 = scalar_select %p217, %s21, 1
      %p219 = scmp.lt.s32.totalorder %s20, 1
      %s220 = scalar_select %p219, %s20, 1
      %p221 = scmp.lt.s32.totalorder %s22, 0
      %s222 = scalar_select %p221, %s22, 0
      %s223 = smul.addr %s222, 8
      %s224 = smul.addr %s220, 8
      %s225 = sadd.s32 %s223, %s224
      %s226 = smul.addr %s218, 16
      %s227 = sadd.s32 %s225, %s226
      %s228 = smul.addr %s227, 4
      %s229 = scalar_lea.vmem %s0, %s228
      %p230 = pneg %p65
      %p231 = pneg %p62
      %p232 = scmp.lt.s32.totalorder %s20, 1
      %s233 = scalar_select %p232, %s20, 1
      %p234 = scmp.lt.s32.totalorder %s23, 0
      %s235 = scalar_select %p234, %s23, 0
      %s236 = smul.addr %s235, 2
      %s237 = smul.addr %s233, 2
      %s238 = sadd.s32 %s236, %s237
      %s239 = smul.addr %s238, 2
      %s240 = scalar_lea.vmem %s1, %s239
      %p241 = pneg %p93
      %p242 = pneg %p90
      %p243 = scmp.lt.s32.totalorder %s20, 1
      %s244 = scalar_select %p243, %s20, 1
      %p245 = scmp.lt.s32.totalorder %s23, 0
      %s246 = scalar_select %p245, %s23, 0
      %s247 = sadd.s32 %s246, %s244
      %s248 = smul.addr %s247, 4
      %s249 = scalar_lea.vmem %s2, %s248
      %p250 = pneg %p121
      %p251 = pneg %p118
      %p252 = pneg %p153
      %p253 = pneg %p150
      %s254 = smul.u32 3, %s22
      %p255 = scmp.lt.s32.totalorder %s21, 1
      %s256 = scalar_select %p255, %s21, 1
      %p257 = scmp.lt.s32.totalorder %s20, 1
      %s258 = scalar_select %p257, %s20, 1
      %p259 = scmp.lt.s32.totalorder %s23, 0
      %s260 = scalar_select %p259, %s23, 0
      %p261 = scmp.lt.s32.totalorder %s254, 2
      %s262 = scalar_select %p261, %s254, 2
      %s263 = smul.addr %s260, 3
      %s264 = sadd.s32 %s262, %s263
      %s265 = smul.addr %s258, 3
      %s266 = sadd.s32 %s264, %s265
      %s267 = smul.addr %s256, 6
      %s268 = sadd.s32 %s266, %s267
      %s269 = smul.addr %s268, 4
      %s270 = scalar_lea.vmem %s3, %s269
      %p271 = scmp.lt.s32.totalorder %s21, 1
      %s272 = scalar_select %p271, %s21, 1
      %p273 = scmp.lt.s32.totalorder %s20, 1
      %s274 = scalar_select %p273, %s20, 1
      %p275 = scmp.lt.s32.totalorder %s22, 0
      %s276 = scalar_select %p275, %s22, 0
      %s277 = smul.addr %s276, 8
      %s278 = smul.addr %s274, 8
      %s279 = sadd.s32 %s277, %s278
      %s280 = smul.addr %s272, 16
      %s281 = sadd.s32 %s279, %s280
      %s282 = smul.addr %s281, 4
      %s283 = scalar_lea.vmem %s0, %s282
      %p284 = scmp.lt.s32.totalorder %s20, 1
      %s285 = scalar_select %p284, %s20, 1
      %p286 = scmp.lt.s32.totalorder %s23, 0
      %s287 = scalar_select %p286, %s23, 0
      %s288 = smul.addr %s287, 2
      %s289 = smul.addr %s285, 2
      %s290 = sadd.s32 %s288, %s289
      %s291 = smul.addr %s290, 2
      %s292 = scalar_lea.vmem %s1, %s291
      %p293 = scmp.lt.s32.totalorder %s20, 1
      %s294 = scalar_select %p293, %s20, 1
      %p295 = scmp.lt.s32.totalorder %s23, 0
      %s296 = scalar_select %p295, %s23, 0
      %s297 = sadd.s32 %s296, %s294
      %s298 = smul.addr %s297, 4
      %s299 = scalar_lea.vmem %s2, %s298
      %s300 = smul.u32 3, %s22
      %p301 = scmp.lt.s32.totalorder %s21, 1
      %s302 = scalar_select %p301, %s21, 1
      %p303 = scmp.lt.s32.totalorder %s20, 1
      %s304 = scalar_select %p303, %s20, 1
      %p305 = scmp.lt.s32.totalorder %s23, 0
      %s306 = scalar_select %p305, %s23, 0
      %p307 = scmp.lt.s32.totalorder %s300, 2
      %s308 = scalar_select %p307, %s300, 2
      %s309 = smul.addr %s306, 3
      %s310 = sadd.s32 %s308, %s309
      %s311 = smul.addr %s304, 3
      %s312 = sadd.s32 %s310, %s311
      %s313 = smul.addr %s302, 6
      %s314 = sadd.s32 %s312, %s313
      %s315 = smul.addr %s314, 4
      %s316 = scalar_lea.vmem %s3, %s315
      %s317 = smul.u32 3, %s22
      %v319 = vld [vmem:[%s283] sm:$0xff]
      %v320 = vld [vmem:[%s283 + $0x8] sm:$0xf]
      %v321 = vld [vmem:[%s283 + $0x10] sm:$0xff]
      %v322 = vld [vmem:[%s283 + $0x18] sm:$0xf]
      %323 = vst [vmem:[#allocation2] sm:$0xff] %v319
      %324 = vst [vmem:[#allocation2 + $0x8] sm:$0xf] %v320
      %325 = vst [vmem:[#allocation2 + $0xc] sm:$0xff] %v321
      %326 = vst [vmem:[#allocation2 + $0x14] sm:$0xf] %v322
      %v327 = vld [vmem:[%s283] sm:$0xff]
      %v328 = vld [vmem:[%s283 + $0x8] sm:$0xff]
      %v329 = vld [vmem:[%s283 + $0x10] sm:$0xff]
      %v330 = vld [vmem:[%s283 + $0x18] sm:$0xff]
      %335 = vrot.lane.b32.xlu0 %v327, 127
      %v336 = vpop.permute.xlu0 %335
      %337 = vrot.lane.b32.xlu0 %v328, 127
      %v338 = vpop.permute.xlu0 %337
      %339 = vrot.lane.b32.xlu0 %v329, 127
      %v340 = vpop.permute.xlu0 %339
      %341 = vrot.lane.b32.xlu0 %v330, 127
      %v342 = vpop.permute.xlu0 %341
      %v343 = vrot.slane %v336, 4
      %v344 = vrot.slane %v338, 4
      %v345 = vrot.slane %v340, 4
      %v346 = vrot.slane %v342, 4
      %vm347 = vcmask 1043456
      %v348 = vsel %vm347, %v343, %v344
      %vm349 = vcmask 1039360
      %v350 = vsel %vm349, %v336, %v348
      %v351 = vsel %vm349, %v338, %v344
      %v352 = vsel %vm347, %v345, %v346
      %v353 = vsel %vm349, %v340, %v352
      %v354 = vsel %vm349, %v342, %v346
      %359 = vst [vmem:[#allocation2 + $0x18] sm:$0xff] %v350
      %360 = vst [vmem:[#allocation2 + $0x20] sm:$0xf] %v351
      %361 = vst [vmem:[#allocation2 + $0x24] sm:$0xff] %v353
      %362 = vst [vmem:[#allocation2 + $0x2c] sm:$0xf] %v354
      %v363 = vld [vmem:[%s283] sm:$0xff]
      %v364 = vld [vmem:[%s283 + $0x8] sm:$0xff]
      %v365 = vld [vmem:[%s283 + $0x10] sm:$0xff]
      %v366 = vld [vmem:[%s283 + $0x18] sm:$0xff]
      %371 = vrot.lane.b32.xlu0 %v363, 126
      %v372 = vpop.permute.xlu0 %371
      %373 = vrot.lane.b32.xlu0 %v364, 126
      %v374 = vpop.permute.xlu0 %373
      %375 = vrot.lane.b32.xlu0 %v365, 126
      %v376 = vpop.permute.xlu0 %375
      %377 = vrot.lane.b32.xlu0 %v366, 126
      %v378 = vpop.permute.xlu0 %377
      %v379 = vrot.slane %v372, 4
      %v380 = vrot.slane %v374, 4
      %v381 = vrot.slane %v376, 4
      %v382 = vrot.slane %v378, 4
      %v383 = vsel %vm347, %v379, %v380
      %vm384 = vcmask 1031168
      %v385 = vsel %vm384, %v372, %v383
      %v386 = vsel %vm384, %v374, %v380
      %v387 = vsel %vm347, %v381, %v382
      %v388 = vsel %vm384, %v376, %v387
      %v389 = vsel %vm384, %v378, %v382
      %394 = vst [vmem:[#allocation2 + $0x30] sm:$0xff] %v385
      %395 = vst [vmem:[#allocation2 + $0x38] sm:$0xf] %v386
      %396 = vst [vmem:[#allocation2 + $0x3c] sm:$0xff] %v388
      %397 = vst [vmem:[#allocation2 + $0x44] sm:$0xf] %v389
      %v398 = vld [vmem:[%s283] sm:$0xff]
      %v399 = vld [vmem:[%s283 + $0x8] sm:$0xff]
      %v400 = vld [vmem:[%s283 + $0x10] sm:$0xff]
      %v401 = vld [vmem:[%s283 + $0x18] sm:$0xff]
      %406 = vrot.lane.b32.xlu0 %v398, 110
      %v407 = vpop.permute.xlu0 %406
      %408 = vrot.lane.b32.xlu0 %v399, 110
      %v409 = vpop.permute.xlu0 %408
      %410 = vrot.lane.b32.xlu0 %v400, 110
      %v411 = vpop.permute.xlu0 %410
      %412 = vrot.lane.b32.xlu0 %v401, 110
      %v413 = vpop.permute.xlu0 %412
      %v414 = vrot.slane %v407, 4
      %v415 = vrot.slane %v409, 4
      %v416 = vrot.slane %v411, 4
      %v417 = vrot.slane %v413, 4
      %v418 = vsel %vm347, %v414, %v415
      %vm419 = vcmask 900096
      %v420 = vsel %vm419, %v407, %v418
      %v421 = vsel %vm419, %v409, %v415
      %v422 = vsel %vm347, %v416, %v417
      %v423 = vsel %vm419, %v411, %v422
      %v424 = vsel %vm419, %v413, %v417
      %429 = vst [vmem:[#allocation2 + $0x48] sm:$0xff] %v420
      %430 = vst [vmem:[#allocation2 + $0x50] sm:$0xf] %v421
      %431 = vst [vmem:[#allocation2 + $0x54] sm:$0xff] %v423
      %432 = vst [vmem:[#allocation2 + $0x5c] sm:$0xf] %v424
      %v433 = vld [vmem:[%s283] sm:$0xff]
      %v434 = vld [vmem:[%s283 + $0x8] sm:$0xff]
      %v435 = vld [vmem:[%s283 + $0x10] sm:$0xff]
      %v436 = vld [vmem:[%s283 + $0x18] sm:$0xff]
      %441 = vrot.lane.b32.xlu0 %v433, 109
      %v442 = vpop.permute.xlu0 %441
      %443 = vrot.lane.b32.xlu0 %v434, 109
      %v444 = vpop.permute.xlu0 %443
      %445 = vrot.lane.b32.xlu0 %v435, 109
      %v446 = vpop.permute.xlu0 %445
      %447 = vrot.lane.b32.xlu0 %v436, 109
      %v448 = vpop.permute.xlu0 %447
      %v449 = vrot.slane %v442, 4
      %v450 = vrot.slane %v444, 4
      %v451 = vrot.slane %v446, 4
      %v452 = vrot.slane %v448, 4
      %v453 = vsel %vm347, %v449, %v450
      %vm454 = vcmask 891904
      %v455 = vsel %vm454, %v442, %v453
      %v456 = vsel %vm454, %v444, %v450
      %v457 = vsel %vm347, %v451, %v452
      %v458 = vsel %vm454, %v446, %v457
      %v459 = vsel %vm454, %v448, %v452
      %464 = vst [vmem:[#allocation2 + $0x60] sm:$0xff] %v455
      %465 = vst [vmem:[#allocation2 + $0x68] sm:$0xf] %v456
      %466 = vst [vmem:[#allocation2 + $0x6c] sm:$0xff] %v458
      %467 = vst [vmem:[#allocation2 + $0x74] sm:$0xf] %v459
      %v468 = vld [vmem:[%s283] sm:$0xff]
      %v469 = vld [vmem:[%s283 + $0x8] sm:$0xff]
      %v470 = vld [vmem:[%s283 + $0x10] sm:$0xff]
      %v471 = vld [vmem:[%s283 + $0x18] sm:$0xff]
      %476 = vrot.lane.b32.xlu0 %v468, 108
      %v477 = vpop.permute.xlu0 %476
      %478 = vrot.lane.b32.xlu0 %v469, 108
      %v479 = vpop.permute.xlu0 %478
      %480 = vrot.lane.b32.xlu0 %v470, 108
      %v481 = vpop.permute.xlu0 %480
      %482 = vrot.lane.b32.xlu0 %v471, 108
      %v483 = vpop.permute.xlu0 %482
      %v484 = vrot.slane %v477, 4
      %v485 = vrot.slane %v479, 4
      %v486 = vrot.slane %v481, 4
      %v487 = vrot.slane %v483, 4
      %v488 = vsel %vm347, %v484, %v485
      %vm489 = vcmask 883712
      %v490 = vsel %vm489, %v477, %v488
      %v491 = vsel %vm489, %v479, %v485
      %v492 = vsel %vm347, %v486, %v487
      %v493 = vsel %vm489, %v481, %v492
      %v494 = vsel %vm489, %v483, %v487
      %499 = vst [vmem:[#allocation2 + $0x78] sm:$0xff] %v490
      %500 = vst [vmem:[#allocation2 + $0x80] sm:$0xf] %v491
      %501 = vst [vmem:[#allocation2 + $0x84] sm:$0xff] %v493
      %502 = vst [vmem:[#allocation2 + $0x8c] sm:$0xf] %v494
      %v503 = vld [vmem:[%s283] sm:$0xff]
      %v504 = vld [vmem:[%s283 + $0x8] sm:$0xff]
      %v505 = vld [vmem:[%s283 + $0x10] sm:$0xff]
      %v506 = vld [vmem:[%s283 + $0x18] sm:$0xff]
      %511 = vrot.lane.b32.xlu0 %v503, 92
      %v512 = vpop.permute.xlu0 %511
      %513 = vrot.lane.b32.xlu0 %v504, 92
      %v514 = vpop.permute.xlu0 %513
      %515 = vrot.lane.b32.xlu0 %v505, 92
      %v516 = vpop.permute.xlu0 %515
      %517 = vrot.lane.b32.xlu0 %v506, 92
      %v518 = vpop.permute.xlu0 %517
      %v519 = vrot.slane %v512, 4
      %v520 = vrot.slane %v514, 4
      %v521 = vrot.slane %v516, 4
      %v522 = vrot.slane %v518, 4
      %v523 = vsel %vm347, %v519, %v520
      %vm524 = vcmask 752640
      %v525 = vsel %vm524, %v512, %v523
      %v526 = vsel %vm524, %v514, %v520
      %v527 = vsel %vm347, %v521, %v522
      %v528 = vsel %vm524, %v516, %v527
      %v529 = vsel %vm524, %v518, %v522
      %534 = vst [vmem:[#allocation2 + $0x90] sm:$0xff] %v525
      %535 = vst [vmem:[#allocation2 + $0x98] sm:$0xf] %v526
      %536 = vst [vmem:[#allocation2 + $0x9c] sm:$0xff] %v528
      %537 = vst [vmem:[#allocation2 + $0xa4] sm:$0xf] %v529
      %v538 = vld [vmem:[%s283] sm:$0xff]
      %v539 = vld [vmem:[%s283 + $0x8] sm:$0xff]
      %v540 = vld [vmem:[%s283 + $0x10] sm:$0xff]
      %v541 = vld [vmem:[%s283 + $0x18] sm:$0xff]
      %546 = vrot.lane.b32.xlu0 %v538, 91
      %v547 = vpop.permute.xlu0 %546
      %548 = vrot.lane.b32.xlu0 %v539, 91
      %v549 = vpop.permute.xlu0 %548
      %550 = vrot.lane.b32.xlu0 %v540, 91
      %v551 = vpop.permute.xlu0 %550
      %552 = vrot.lane.b32.xlu0 %v541, 91
      %v553 = vpop.permute.xlu0 %552
      %v554 = vrot.slane %v547, 4
      %v555 = vrot.slane %v549, 4
      %v556 = vrot.slane %v551, 4
      %v557 = vrot.slane %v553, 4
      %v558 = vsel %vm347, %v554, %v555
      %vm559 = vcmask 744448
      %v560 = vsel %vm559, %v547, %v558
      %v561 = vsel %vm559, %v549, %v555
      %v562 = vsel %vm347, %v556, %v557
      %v563 = vsel %vm559, %v551, %v562
      %v564 = vsel %vm559, %v553, %v557
      %569 = vst [vmem:[#allocation2 + $0xa8] sm:$0xff] %v560
      %570 = vst [vmem:[#allocation2 + $0xb0] sm:$0xf] %v561
      %571 = vst [vmem:[#allocation2 + $0xb4] sm:$0xff] %v563
      %572 = vst [vmem:[#allocation2 + $0xbc] sm:$0xf] %v564
      %v573 = vld [vmem:[%s283] sm:$0xff]
      %v574 = vld [vmem:[%s283 + $0x8] sm:$0xff]
      %v575 = vld [vmem:[%s283 + $0x10] sm:$0xff]
      %v576 = vld [vmem:[%s283 + $0x18] sm:$0xff]
      %581 = vrot.lane.b32.xlu0 %v573, 90
      %v582 = vpop.permute.xlu0 %581
      %583 = vrot.lane.b32.xlu0 %v574, 90
      %v584 = vpop.permute.xlu0 %583
      %585 = vrot.lane.b32.xlu0 %v575, 90
      %v586 = vpop.permute.xlu0 %585
      %587 = vrot.lane.b32.xlu0 %v576, 90
      %v588 = vpop.permute.xlu0 %587
      %v589 = vrot.slane %v582, 4
      %v590 = vrot.slane %v584, 4
      %v591 = vrot.slane %v586, 4
      %v592 = vrot.slane %v588, 4
      %v593 = vsel %vm347, %v589, %v590
      %vm594 = vcmask 736256
      %v595 = vsel %vm594, %v582, %v593
      %v596 = vsel %vm594, %v584, %v590
      %v597 = vsel %vm347, %v591, %v592
      %v598 = vsel %vm594, %v586, %v597
      %v599 = vsel %vm594, %v588, %v592
      %604 = vst [vmem:[#allocation2 + $0xc0] sm:$0xff] %v595
      %605 = vst [vmem:[#allocation2 + $0xc8] sm:$0xf] %v596
      %606 = vst [vmem:[#allocation2 + $0xcc] sm:$0xff] %v598
      %607 = vst [vmem:[#allocation2 + $0xd4] sm:$0xf] %v599
      %v608 = vld [vmem:[%s292] sm:$0xf]
      %v609 = vld [vmem:[#allocation2] sm:$0xff]
      %v610 = vld [vmem:[#allocation2 + $0x8] sm:$0xf]
      %v611 = vld [vmem:[#allocation2 + $0xc] sm:$0xff]
      %v612 = vld [vmem:[#allocation2 + $0x14] sm:$0xf]
      %v613 = vld [vmem:[#allocation2 + $0x18] sm:$0xff]
      %v614 = vld [vmem:[#allocation2 + $0x20] sm:$0xf]
      %v615 = vld [vmem:[#allocation2 + $0x24] sm:$0xff]
      %v616 = vld [vmem:[#allocation2 + $0x2c] sm:$0xf]
      %v617 = vld [vmem:[#allocation2 + $0x30] sm:$0xff]
      %v618 = vld [vmem:[#allocation2 + $0x38] sm:$0xf]
      %v619 = vld [vmem:[#allocation2 + $0x3c] sm:$0xff]
      %v620 = vld [vmem:[#allocation2 + $0x44] sm:$0xf]
      %v621 = vld [vmem:[#allocation2 + $0x48] sm:$0xff]
      %v622 = vld [vmem:[#allocation2 + $0x50] sm:$0xf]
      %v623 = vld [vmem:[#allocation2 + $0x54] sm:$0xff]
      %v624 = vld [vmem:[#allocation2 + $0x5c] sm:$0xf]
      %v625 = vld [vmem:[#allocation2 + $0x60] sm:$0xff]
      %v626 = vld [vmem:[#allocation2 + $0x68] sm:$0xf]
      %v627 = vld [vmem:[#allocation2 + $0x6c] sm:$0xff]
      %v628 = vld [vmem:[#allocation2 + $0x74] sm:$0xf]
      %v629 = vld [vmem:[#allocation2 + $0x78] sm:$0xff]
      %v630 = vld [vmem:[#allocation2 + $0x80] sm:$0xf]
      %v631 = vld [vmem:[#allocation2 + $0x84] sm:$0xff]
      %v632 = vld [vmem:[#allocation2 + $0x8c] sm:$0xf]
      %v633 = vld [vmem:[#allocation2 + $0x90] sm:$0xff]
      %v634 = vld [vmem:[#allocation2 + $0x98] sm:$0xf]
      %v635 = vld [vmem:[#allocation2 + $0x9c] sm:$0xff]
      %v636 = vld [vmem:[#allocation2 + $0xa4] sm:$0xf]
      %v637 = vld [vmem:[#allocation2 + $0xa8] sm:$0xff]
      %v638 = vld [vmem:[#allocation2 + $0xb0] sm:$0xf]
      %v639 = vld [vmem:[#allocation2 + $0xb4] sm:$0xff]
      %v640 = vld [vmem:[#allocation2 + $0xbc] sm:$0xf]
      %v641 = vld [vmem:[#allocation2 + $0xc0] sm:$0xff]
      %v642 = vld [vmem:[#allocation2 + $0xc8] sm:$0xf]
      %v643 = vld [vmem:[#allocation2 + $0xcc] sm:$0xff]
      %v644 = vld [vmem:[#allocation2 + $0xd4] sm:$0xf]
      %v645 = vld [vmem:[%s299] sm:$0xf]
      %647 = vset.pattern.permute.xlu0 0
      %648 = vperm.xlu0 %647, %v645
      %v649 = vpop.permute.xlu0 %648
      %652 = vst [vmem:[#allocation1] ss:$4 sm:$0xff] %v608
      %v653 = vld.sshfl [vmem:[#allocation1] sm:$0xff pattern:$0x73625140]
      %v654 = vld.sshfl [vmem:[#allocation1 + $0x8] sm:$0xff pattern:$0x73625140]
      %v692 = vunpack.c.l.b16 %v609
      %v693 = vunpack.c.h.b16 %v609
      %v694 = vunpack.c.l.b16 %v610
      %v695 = vunpack.c.l.b16 %v611
      %v696 = vunpack.c.h.b16 %v611
      %v697 = vunpack.c.l.b16 %v612
      %v698 = vunpack.c.l.b16 %v613
      %v699 = vunpack.c.h.b16 %v613
      %v700 = vunpack.c.l.b16 %v614
      %v701 = vunpack.c.l.b16 %v615
      %v702 = vunpack.c.h.b16 %v615
      %v703 = vunpack.c.l.b16 %v616
      %v704 = vunpack.c.l.b16 %v617
      %v705 = vunpack.c.h.b16 %v617
      %v706 = vunpack.c.l.b16 %v618
      %v707 = vunpack.c.l.b16 %v619
      %v708 = vunpack.c.h.b16 %v619
      %v709 = vunpack.c.l.b16 %v620
      %v710 = vunpack.c.l.b16 %v621
      %v711 = vunpack.c.h.b16 %v621
      %v712 = vunpack.c.l.b16 %v622
      %v713 = vunpack.c.l.b16 %v623
      %v714 = vunpack.c.h.b16 %v623
      %v715 = vunpack.c.l.b16 %v624
      %v716 = vunpack.c.l.b16 %v625
      %v717 = vunpack.c.h.b16 %v625
      %v718 = vunpack.c.l.b16 %v626
      %v719 = vunpack.c.l.b16 %v627
      %v720 = vunpack.c.h.b16 %v627
      %v721 = vunpack.c.l.b16 %v628
      %v722 = vunpack.c.l.b16 %v629
      %v723 = vunpack.c.h.b16 %v629
      %v724 = vunpack.c.l.b16 %v630
      %v725 = vunpack.c.l.b16 %v631
      %v726 = vunpack.c.h.b16 %v631
      %v727 = vunpack.c.l.b16 %v632
      %v728 = vunpack.c.l.b16 %v633
      %v729 = vunpack.c.h.b16 %v633
      %v730 = vunpack.c.l.b16 %v634
      %v731 = vunpack.c.l.b16 %v635
      %v732 = vunpack.c.h.b16 %v635
      %v733 = vunpack.c.l.b16 %v636
      %v734 = vunpack.c.l.b16 %v637
      %v735 = vunpack.c.h.b16 %v637
      %v736 = vunpack.c.l.b16 %v638
      %v737 = vunpack.c.l.b16 %v639
      %v738 = vunpack.c.h.b16 %v639
      %v739 = vunpack.c.l.b16 %v640
      %v740 = vunpack.c.l.b16 %v641
      %v741 = vunpack.c.h.b16 %v641
      %v742 = vunpack.c.l.b16 %v642
      %v743 = vunpack.c.l.b16 %v643
      %v744 = vunpack.c.h.b16 %v643
      %v745 = vunpack.c.l.b16 %v644
      %v746 = vpack.c.b16 %v695, %v692
      %v747 = vpack.c.b16 %v696, %v693
      %v748 = vpack.c.b16 %v697, %v694
      %v749 = vpack.c.b16 %v701, %v698
      %v750 = vpack.c.b16 %v702, %v699
      %v751 = vpack.c.b16 %v703, %v700
      %v752 = vpack.c.b16 %v707, %v704
      %v753 = vpack.c.b16 %v708, %v705
      %v754 = vpack.c.b16 %v709, %v706
      %v755 = vpack.c.b16 %v713, %v710
      %v756 = vpack.c.b16 %v714, %v711
      %v757 = vpack.c.b16 %v715, %v712
      %v758 = vpack.c.b16 %v719, %v716
      %v759 = vpack.c.b16 %v720, %v717
      %v760 = vpack.c.b16 %v721, %v718
      %v761 = vpack.c.b16 %v725, %v722
      %v762 = vpack.c.b16 %v726, %v723
      %v763 = vpack.c.b16 %v727, %v724
      %v764 = vpack.c.b16 %v731, %v728
      %v765 = vpack.c.b16 %v732, %v729
      %v766 = vpack.c.b16 %v733, %v730
      %v767 = vpack.c.b16 %v737, %v734
      %v768 = vpack.c.b16 %v738, %v735
      %v769 = vpack.c.b16 %v739, %v736
      %v770 = vpack.c.b16 %v743, %v740
      %v771 = vpack.c.b16 %v744, %v741
      %v772 = vpack.c.b16 %v745, %v742
      %vm800 = vcmask 130048
      %v801 = vsel %vm800, %v654, 0
      %803 = vmatpush.bf16.msra.mxu0 %v767
      %804 = vmatpush.bf16.msra.mxu0 %v764
      %805 = vmatpush.bf16.msra.mxu0 %v761
      %806 = vmatpush.bf16.msra.mxu0 %v758
      %807 = vmatpush.bf16.msra.mxu0 %v755
      %808 = vmatpush.bf16.msra.mxu0 %v752
      %809 = vmatpush.bf16.msra.mxu0 %v749
      %810 = vmatpush.bf16.msra.mxu0 %v746
      %811 = vmatmul.bf16.gmra.mxu0 %v653
      %v812 = vpop.f32.mrf.mxu0
      %v813 = vadd.f32 %v649, %v812
      %v814 = vpop.f32.mrf.mxu0
      %815 = vdwg.mxu0
      %816 = vmatpush.bf16.msra.mxu0 0
      %817 = vmatpush.bf16.msra.mxu0 0
      %818 = vmatpush.bf16.msra.mxu0 0
      %819 = vmatpush.bf16.msra.mxu0 0
      %820 = vmatpush.bf16.msra.mxu0 0
      %821 = vmatpush.bf16.msra.mxu0 0
      %822 = vmatpush.bf16.msra.mxu0 0
      %823 = vmatpush.bf16.msra.mxu0 %v770
      %824 = vmatmul.bf16.gmra.mxu0 %v801
      %v825 = vpop.f32.mrf.mxu0
      %v826 = vadd.f32 %v813, %v825
      %v827 = vpop.f32.mrf.mxu0
      %828 = vdwg.mxu0
      %829 = vmatpush.bf16.msra.mxu0 %v768
      %830 = vmatpush.bf16.msra.mxu0 %v765
      %831 = vmatpush.bf16.msra.mxu0 %v762
      %832 = vmatpush.bf16.msra.mxu0 %v759
      %833 = vmatpush.bf16.msra.mxu0 %v756
      %834 = vmatpush.bf16.msra.mxu0 %v753
      %835 = vmatpush.bf16.msra.mxu0 %v750
      %836 = vmatpush.bf16.msra.mxu0 %v747
      %837 = vmatmul.bf16.gmra.mxu0 %v653
      %v838 = vpop.f32.mrf.mxu0
      %v839 = vadd.f32 %v649, %v838
      %v840 = vpop.f32.mrf.mxu0
      %841 = vdwg.mxu0
      %842 = vmatpush.bf16.msra.mxu0 0
      %843 = vmatpush.bf16.msra.mxu0 0
      %844 = vmatpush.bf16.msra.mxu0 0
      %845 = vmatpush.bf16.msra.mxu0 0
      %846 = vmatpush.bf16.msra.mxu0 0
      %847 = vmatpush.bf16.msra.mxu0 0
      %848 = vmatpush.bf16.msra.mxu0 0
      %849 = vmatpush.bf16.msra.mxu0 %v771
      %850 = vmatmul.bf16.gmra.mxu0 %v801
      %v851 = vpop.f32.mrf.mxu0
      %v852 = vadd.f32 %v839, %v851
      %v853 = vpop.f32.mrf.mxu0
      %854 = vdwg.mxu0
      %855 = vmatpush.bf16.msra.mxu0 %v769
      %856 = vmatpush.bf16.msra.mxu0 %v766
      %857 = vmatpush.bf16.msra.mxu0 %v763
      %858 = vmatpush.bf16.msra.mxu0 %v760
      %859 = vmatpush.bf16.msra.mxu0 %v757
      %860 = vmatpush.bf16.msra.mxu0 %v754
      %861 = vmatpush.bf16.msra.mxu0 %v751
      %862 = vmatpush.bf16.msra.mxu0 %v748
      %863 = vmatmul.bf16.gmra.mxu0 %v653
      %v864 = vpop.f32.mrf.mxu0
      %v865 = vadd.f32 %v649, %v864
      %v866 = vpop.f32.mrf.mxu0
      %867 = vdwg.mxu0
      %868 = vmatpush.bf16.msra.mxu0 0
      %869 = vmatpush.bf16.msra.mxu0 0
      %870 = vmatpush.bf16.msra.mxu0 0
      %871 = vmatpush.bf16.msra.mxu0 0
      %872 = vmatpush.bf16.msra.mxu0 0
      %873 = vmatpush.bf16.msra.mxu0 0
      %874 = vmatpush.bf16.msra.mxu0 0
      %875 = vmatpush.bf16.msra.mxu0 %v772
      %876 = vmatmul.bf16.gmra.mxu0 %v801
      %v877 = vpop.f32.mrf.mxu0
      %v878 = vadd.f32 %v865, %v877
      %v879 = vpop.f32.mrf.mxu0
      %880 = vdwg.mxu0
      %v883 = vrot.slane %v852, 4
      %vm884 = vcmask 1043456
      %v885 = vsel %vm884, %v826, %v883
      %887 = vst [vmem:[%s316] sm:$0xff] %v885
      %888 = vst [vmem:[%s316 + $0x8] sm:$0xf] %v878
      %s889 = smul.u32 3, %s22
      %p890 = scmp.lt.s32.totalorder %s21, 1
      %s891 = scalar_select %p890, %s21, 1
      %p892 = scmp.lt.s32.totalorder %s20, 1
      %s893 = scalar_select %p892, %s20, 1
      %p894 = scmp.lt.s32.totalorder %s23, 0
      %s895 = scalar_select %p894, %s23, 0
      %p896 = scmp.lt.s32.totalorder %s889, 2
      %s897 = scalar_select %p896, %s889, 2
      %s898 = smul.addr %s895, 3
      %s899 = sadd.s32 %s897, %s898
      %s900 = smul.addr %s893, 3
      %s901 = sadd.s32 %s899, %s900
      %s902 = smul.addr %s891, 6
      %s903 = sadd.s32 %s901, %s902
      %s904 = smul.addr %s903, 4
      %s905 = scalar_lea.vmem %s3, %s904
      // Predicated region
      $region33: #{conv2d_pallas.1} parent=31 // pred_check
        %p906 = pneg %p150
      $region34: #{conv2d_pallas.1} parent=31 // pred_check_branch
        %908 = sbr.rel (%p906) target = $region36
      $region35: #{conv2d_pallas.1} parent=31 // pred_region
        %s909 = smul.u32 3, %s22
      $region36: #{conv2d_pallas.1} parent=31 // pred_fallthru
        _
    $region32: #{conv2d_pallas.1} parent=5 // pred_fallthru
      _
    %p910 = scmp.le.s32.totalorder 2, %s9
    // Predicated region
    $region37: #{conv2d_pallas.1} parent=5 // pred_check
      %p911 = pneg %p910
    $region38: #{conv2d_pallas.1} parent=5 // pred_check_branch
      %913 = sbr.rel (%p911) target = $region40
    $region39: #{conv2d_pallas.1} parent=5 // pred_region
      %s914 = ssub.s32 %s9, 2
      // Predicated region
      $region41: #{conv2d_pallas.1} parent=39 // pred_check
        %p915 = pneg %p156
      $region42: #{conv2d_pallas.1} parent=39 // pred_check_branch
        %917 = sbr.rel (%p915) target = $region44
      $region43: #{conv2d_pallas.1} parent=39 // pred_region
        %s918 = smul.u32 3, %s26
        %p919 = scmp.lt.s32.totalorder %s25, 1
        %s920 = scalar_select %p919, %s25, 1
        %p921 = scmp.lt.s32.totalorder %s24, 1
        %s922 = scalar_select %p921, %s24, 1
        %p923 = scmp.lt.s32.totalorder %s27, 0
        %s924 = scalar_select %p923, %s27, 0
        %p925 = scmp.lt.s32.totalorder %s918, 2
        %s926 = scalar_select %p925, %s918, 2
        %s927 = smul.addr %s924, 3
        %s928 = sadd.s32 %s926, %s927
        %s929 = smul.addr %s922, 3
        %s930 = sadd.s32 %s928, %s929
        %s931 = smul.addr %s920, 6
        %s932 = sadd.s32 %s930, %s931
        %s933 = smul.addr %s932, 4
        %s934 = scalar_lea.vmem %s3, %s933
      $region44: #{conv2d_pallas.1} parent=39 // pred_fallthru
        _
    $region40: #{conv2d_pallas.1} parent=5 // pred_fallthru
      _
  $region6: #{conv2d_pallas.1} parent=0 // loop_footer
    %s13 = sadd.s32 1, %s9
  $region7: #{conv2d_pallas.1} parent=0 // loop_footer_branch
    %8 = sbr.rel target = $region3
  $region8: #{conv2d_pallas.1} parent=0 // loop_exit
    _

</llo_original>
